<compile_context>
chip_gen: v7x
topology: tpu7x:2x2x1
jax: 0.10.0
libtpu: 0.0.40
codegen_flags: <defaults>
</compile_context>

<pallas_src>
import functools

import jax
import jax.numpy as jnp
from jax.experimental import pallas as pl
from jax.experimental.pallas import tpu as pltpu


def _round_up(v, m):
    return (v + m - 1) // m * m


# ----------------------------------------------------------------------------
# Pallas kernel: full RiskGNN forward (2 packed inputs)
# ----------------------------------------------------------------------------
def _risk_gnn_kernel(
    slab_ref,   # (R, W)  narrow slab: [adj | x | w1 | w2 | bias block | selectors]
    mlp_ref,    # (2H + A_pad + 1, 128): [mw1_att; mw1_def; act_bias; mw2^T]
    out_ref,    # (A_pad, 1) logits column
    *, n_nodes, fin, hidden, a_pad, off_x, off_w1, off_w2, off_bias, off_sel,
):
    f32 = jnp.float32

    # ---- static, 8-row-aligned sub-slices of the narrow slab --------------
    adj = slab_ref[0:n_nodes, 0:n_nodes]                      # (N, N)
    x = slab_ref[off_x:off_x + n_nodes, 0:fin]                # (N, Fin)
    w1 = slab_ref[off_w1:off_w1 + fin, 0:hidden]              # (Fin, H)
    w2 = slab_ref[off_w2:off_w2 + hidden, 0:hidden]           # (H, H)
    bias_blk = slab_ref[off_bias:off_bias + 8, 0:hidden]      # (8, H)
    b1 = bias_blk[0:1, :]                                     # (1, H)
    b2 = bias_blk[1:2, :]                                     # (1, H)
    mb2 = bias_blk[2:3, 0:1]                                  # (1, 1)
    sel = slab_ref[off_sel:off_sel + 2 * a_pad, 0:n_nodes]    # (2*A_pad, N)

    # ---- GCN layer 1: relu( (A_hat X) W1 + b1 )  (reassociated) -----------
    ax = jnp.dot(adj, x, preferred_element_type=f32)
    h = jnp.maximum(jnp.dot(ax, w1, preferred_element_type=f32) + b1, 0.0)

    # ---- GCN layer 2: relu( A_hat (H W2) + b2 ) ----------------------------
    hw = jnp.dot(h, w2, preferred_element_type=f32)
    h = jnp.maximum(jnp.dot(adj, hw, preferred_element_type=f32) + b2, 0.0)

    # ---- ONE fused gather matmul for attack + defend embeddings -----------
    # Skip actions have all-zero selector rows; their embedding contribution
    # is folded into act_bias on the host side.
    gathered = jnp.dot(sel, h, preferred_element_type=f32)    # (2*A_pad, H)
    att_e = gathered[0:a_pad, :]
    def_e = gathered[a_pad:2 * a_pad, :]

    # ---- MLP layer 1 -------------------------------------------------------
    mw1a = mlp_ref[0:hidden, :]                               # (H, 128)
    mw1d = mlp_ref[hidden:2 * hidden, :]                      # (H, 128)
    act_bias = mlp_ref[2 * hidden:2 * hidden + a_pad, :]      # (A_pad, 128)
    w2row = mlp_ref[2 * hidden + a_pad:2 * hidden + a_pad + 1, :]  # (1, 128)

    hid = jnp.maximum(
        jnp.dot(att_e, mw1a, preferred_element_type=f32)
        + jnp.dot(def_e, mw1d, preferred_element_type=f32)
        + act_bias, 0.0)                                      # (A_pad, 128)

    # ---- MLP layer 2 (128 -> 1): VPU multiply + lane reduce ----------------
    out_ref[...] = jnp.sum(hid * w2row, axis=-1, keepdims=True) + mb2


# ----------------------------------------------------------------------------
# Jitted wrapper: graph preprocessing + slab packing + pallas_call
# ----------------------------------------------------------------------------
@jax.jit
def _forward_impl(params, x, edge_index, atk_idx, dfd_idx, n_sold):
    f32 = jnp.float32
    n_nodes, fin = x.shape
    hidden = params["w1"].shape[1]
    n_act = atk_idx.shape[0]
    a_pad = _round_up(n_act, 8)
    pad_r = a_pad - n_act

    # --- dense symmetric-normalized adjacency (GCNConv with self loops) ----
    src, dst = edge_index[0], edge_index[1]
    adj = jnp.zeros((n_nodes, n_nodes), f32).at[dst, src].add(1.0)
    adj = adj + jnp.eye(n_nodes, dtype=f32)
    deg = adj.sum(axis=1)
    dinv = jnp.where(deg > 0, deg ** -0.5, 0.0)
    adj_norm = dinv[:, None] * adj * dinv[None, :]

    # --- one-hot selectors; skip actions (index -1) become all-zero rows ---
    att_oh = jax.nn.one_hot(atk_idx, n_nodes, dtype=f32)
    def_oh = jax.nn.one_hot(jnp.where(atk_idx < 0, -1, dfd_idx), n_nodes, dtype=f32)
    sel = jnp.concatenate(
        [jnp.pad(att_oh, ((0, pad_r), (0, 0))),
         jnp.pad(def_oh, ((0, pad_r), (0, 0)))], axis=0)      # (2*A_pad, N)

    # --- precomputed per-action bias row (n_soldiers + mb1 + skip embeds) --
    skip = (atk_idx < 0).astype(f32)[:, None]
    skip_contrib = (params["skip_attack"] @ params["mw1_att"]
                    + params["skip_defend"] @ params["mw1_def"])      # (1, 128)
    act_bias = n_sold @ params["mw1_sold"] + params["mb1"] + skip * skip_contrib
    act_bias = jnp.pad(act_bias, ((0, pad_r), (0, 0)))                # (A_pad, 128)

    # --- narrow packed slab (all sections 8-row aligned, width W) ----------
    W = max(hidden, n_nodes, fin)

    def pad_sec(a):
        r, c = a.shape
        return jnp.pad(a, ((0, _round_up(r, 8) - r), (0, W - c)))

    bias_blk = jnp.zeros((8, W), f32)
    bias_blk = bias_blk.at[0, :hidden].set(params["b1"][0])
    bias_blk = bias_blk.at[1, :hidden].set(params["b2"][0])
    bias_blk = bias_blk.at[2, 0].set(params["mb2"][0, 0])

    secs = [pad_sec(adj_norm), pad_sec(x), pad_sec(params["w1"]),
            pad_sec(params["w2"]), bias_blk, pad_sec(sel)]
    offs, r = [], 0
    for s in secs:
        offs.append(r)
        r += s.shape[0]
    slab = jnp.concatenate(secs, axis=0)
    _, off_x, off_w1, off_w2, off_bias, off_sel = offs

    # --- wide MLP slab ------------------------------------------------------
    mlp_slab = jnp.concatenate(
        [params["mw1_att"], params["mw1_def"], act_bias, params["mw2"].T], axis=0)

    kernel = functools.partial(
        _risk_gnn_kernel, n_nodes=n_nodes, fin=fin, hidden=hidden, a_pad=a_pad,
        off_x=off_x, off_w1=off_w1, off_w2=off_w2, off_bias=off_bias,
        off_sel=off_sel)

    vmem = pl.BlockSpec(memory_space=pltpu.MemorySpace.VMEM)
    out = pl.pallas_call(
        kernel,
        out_shape=jax.ShapeDtypeStruct((a_pad, 1), f32),
        in_specs=[vmem, vmem],
        out_specs=vmem,
    )(slab, mlp_slab)
    return out[:n_act, 0]


def risk_gnn_forward(params, x, edge_index, action_lookup_table):
    """Full RiskGNN forward: Python action table -> arrays, then jitted impl."""
    atk_idx = jnp.asarray([a[0] for a in action_lookup_table], jnp.int32)
    dfd_idx = jnp.asarray([a[1] for a in action_lookup_table], jnp.int32)
    n_sold = jnp.asarray([a[2] for a in action_lookup_table], jnp.float32)[:, None]
    return _forward_impl(params, x, edge_index, atk_idx, dfd_idx, n_sold)


# ----------------------------------------------------------------------------
# Pure-JAX reference (mirrors the PyTorch semantics) for verification
# ----------------------------------------------------------------------------
def risk_gnn_reference(params, x, edge_index, action_lookup_table):
    n_nodes = x.shape[0]
    src, dst = edge_index[0], edge_index[1]
    adj = jnp.zeros((n_nodes, n_nodes), jnp.float32).at[dst, src].add(1.0)
    adj = adj + jnp.eye(n_nodes, dtype=jnp.float32)
    deg = adj.sum(axis=1)
    dinv = jnp.where(deg > 0, deg ** -0.5, 0.0)
    adj_norm = dinv[:, None] * adj * dinv[None, :]

    h = jax.nn.relu(adj_norm @ (x @ params["w1"]) + params["b1"])
    h = jax.nn.relu(adj_norm @ (h @ params["w2"]) + params["b2"])

    atk_idx = jnp.asarray([a[0] for a in action_lookup_table], jnp.int32)
    dfd_idx = jnp.asarray([a[1] for a in action_lookup_table], jnp.int32)
    n_sold = jnp.asarray([a[2] for a in action_lookup_table], jnp.float32)[:, None]
    skip = (atk_idx == -1)[:, None]

    att_e = jnp.where(skip, params["skip_attack"],
                      h[jnp.clip(atk_idx, 0, n_nodes - 1)])
    def_e = jnp.where(skip, params["skip_defend"],
                      h[jnp.clip(dfd_idx, 0, n_nodes - 1)])

    w1_full = jnp.concatenate(
        [params["mw1_att"], params["mw1_def"], params["mw1_sold"]], axis=0)
    inp = jnp.concatenate([att_e, def_e, n_sold], axis=1)
    hid = jax.nn.relu(inp @ w1_full + params["mb1"])
    return (hid @ params["mw2"] + params["mb2"])[:, 0]


# ----------------------------------------------------------------------------
if __name__ == "__main__":
    in_channels_node = 8
    hidden_dim = 32
    n_nodes = 16
    n_edges = 40
    mlp_hidden = 128

    key = jax.random.PRNGKey(0)
    keys = jax.random.split(key, 16)

    # Deterministic synthetic parameters (PyTorch __init__ shapes, transposed
    # to [in, out] so kernels do x @ W directly).  Biases / skip embeddings are
    # non-zero so the skip-folding path is actually exercised.
    params = {
        "w1": 0.1 * jax.random.normal(keys[0], (in_channels_node, hidden_dim), jnp.float32),
        "b1": 0.05 * jax.random.normal(keys[1], (1, hidden_dim), jnp.float32),
        "w2": 0.1 * jax.random.normal(keys[2], (hidden_dim, hidden_dim), jnp.float32),
        "b2": 0.05 * jax.random.normal(keys[3], (1, hidden_dim), jnp.float32),
        "skip_attack": 0.1 * jax.random.normal(keys[4], (1, hidden_dim), jnp.float32),
        "skip_defend": 0.1 * jax.random.normal(keys[5], (1, hidden_dim), jnp.float32),
        "mw1_att": 0.1 * jax.random.normal(keys[6], (hidden_dim, mlp_hidden), jnp.float32),
        "mw1_def": 0.1 * jax.random.normal(keys[7], (hidden_dim, mlp_hidden), jnp.float32),
        "mw1_sold": 0.1 * jax.random.normal(keys[8], (1, mlp_hidden), jnp.float32),
        "mb1": 0.05 * jax.random.normal(keys[9], (1, mlp_hidden), jnp.float32),
        "mw2": 0.1 * jax.random.normal(keys[10], (mlp_hidden, 1), jnp.float32),
        "mb2": 0.05 * jax.random.normal(keys[11], (1, 1), jnp.float32),
    }

    # Node features and a random directed edge list.
    x = jax.random.normal(keys[12], (n_nodes, in_channels_node), jnp.float32)
    src = jax.random.randint(keys[13], (n_edges,), 0, n_nodes)
    dst = jax.random.randint(keys[14], (n_edges,), 0, n_nodes)
    edge_index = jnp.stack([src, dst], axis=0)

    # Action lookup table: (attack_node, defend_node, n_soldiers), plus a skip
    # action encoded as (-1, -1, 0) — matches the PyTorch ActionHead contract.
    num_actions = 24
    ks = jax.random.split(keys[15], 3)
    atk = jax.random.randint(ks[0], (num_actions - 1,), 0, n_nodes)
    dfd = jax.random.randint(ks[1], (num_actions - 1,), 0, n_nodes)
    sold = jax.random.randint(ks[2], (num_actions - 1,), 1, 6)
    action_lookup_table = [(-1, -1, 0)] + [
        (int(atk[i]), int(dfd[i]), int(sold[i])) for i in range(num_actions - 1)
    ]

    logits = risk_gnn_forward(params, x, edge_index, action_lookup_table)
    jax.block_until_ready(logits)

    ref = risk_gnn_reference(params, x, edge_index, action_lookup_table)
    assert logits.shape == (num_actions,)
    assert jnp.allclose(logits, ref, atol=2e-4, rtol=1e-4), (
        f"mismatch: max abs err = {jnp.max(jnp.abs(logits - ref))}")

    print("KERNEL_OK")
</pallas_src>

<mosaic_0001>
module attributes {stable_mosaic.version = 11 : i64} {
  func.func @_risk_gnn_kernel(%arg0: memref<128x32xf32, #tpu.memory_space<vmem>>, %arg1: memref<89x128xf32, #tpu.memory_space<vmem>>, %arg2: memref<24x1xf32, #tpu.memory_space<vmem>>) attributes {dimension_semantics = [], scalar_prefetch = 0 : i64, scratch_operands = 0 : i64, tpu.core_type = #tpu.core_type<tc>} {
    %c0 = arith.constant 0 : index
    %c0_0 = arith.constant 0 : index
    %0 = vector.load %arg0[%c0, %c0_0] : memref<128x32xf32, #tpu.memory_space<vmem>>, vector<16x16xf32>
    %c16 = arith.constant 16 : index
    %c0_1 = arith.constant 0 : index
    %1 = vector.load %arg0[%c16, %c0_1] : memref<128x32xf32, #tpu.memory_space<vmem>>, vector<16x8xf32>
    %c32 = arith.constant 32 : index
    %c0_2 = arith.constant 0 : index
    %2 = vector.load %arg0[%c32, %c0_2] : memref<128x32xf32, #tpu.memory_space<vmem>>, vector<8x32xf32>
    %c40 = arith.constant 40 : index
    %c0_3 = arith.constant 0 : index
    %3 = vector.load %arg0[%c40, %c0_3] : memref<128x32xf32, #tpu.memory_space<vmem>>, vector<32x32xf32>
    %c72 = arith.constant 72 : index
    %c0_4 = arith.constant 0 : index
    %4 = vector.load %arg0[%c72, %c0_4] : memref<128x32xf32, #tpu.memory_space<vmem>>, vector<8x32xf32>
    %5 = vector.extract_strided_slice %4 {offsets = [0, 0], sizes = [1, 32], strides = [1, 1]} : vector<8x32xf32> to vector<1x32xf32>
    %6 = vector.extract_strided_slice %4 {offsets = [1, 0], sizes = [1, 32], strides = [1, 1]} : vector<8x32xf32> to vector<1x32xf32>
    %7 = vector.extract_strided_slice %4 {offsets = [2, 0], sizes = [1, 1], strides = [1, 1]} : vector<8x32xf32> to vector<1x1xf32>
    %c80 = arith.constant 80 : index
    %c0_5 = arith.constant 0 : index
    %8 = vector.load %arg0[%c80, %c0_5] : memref<128x32xf32, #tpu.memory_space<vmem>>, vector<48x16xf32>
    %cst = arith.constant dense<0.000000e+00> : vector<16x8xf32>
    %9 = tpu.matmul %0, %1, %cst {dimension_numbers = #tpu.dot_dimension_numbers<[1], [0], [0], [1], [0, 0, 1, 1], [], []>} : vector<16x16xf32>, vector<16x8xf32>, vector<16x8xf32> -> vector<16x8xf32>
    %cst_6 = arith.constant dense<0.000000e+00> : vector<16x32xf32>
    %10 = tpu.matmul %9, %2, %cst_6 {dimension_numbers = #tpu.dot_dimension_numbers<[1], [0], [0], [1], [0, 0, 1, 1], [], []>} : vector<16x8xf32>, vector<8x32xf32>, vector<16x32xf32> -> vector<16x32xf32>
    %11 = vector.broadcast %5 : vector<1x32xf32> to vector<16x32xf32>
    %12 = arith.addf %10, %11 : vector<16x32xf32>
    %cst_7 = arith.constant 0.000000e+00 : f32
    %13 = vector.broadcast %cst_7 : f32 to vector<16x32xf32>
    %14 = arith.maximumf %12, %13 : vector<16x32xf32>
    %cst_8 = arith.constant dense<0.000000e+00> : vector<16x32xf32>
    %15 = tpu.matmul %14, %3, %cst_8 {dimension_numbers = #tpu.dot_dimension_numbers<[1], [0], [0], [1], [0, 0, 1, 1], [], []>} : vector<16x32xf32>, vector<32x32xf32>, vector<16x32xf32> -> vector<16x32xf32>
    %cst_9 = arith.constant dense<0.000000e+00> : vector<16x32xf32>
    %16 = tpu.matmul %0, %15, %cst_9 {dimension_numbers = #tpu.dot_dimension_numbers<[1], [0], [0], [1], [0, 0, 1, 1], [], []>} : vector<16x16xf32>, vector<16x32xf32>, vector<16x32xf32> -> vector<16x32xf32>
    %17 = vector.broadcast %6 : vector<1x32xf32> to vector<16x32xf32>
    %18 = arith.addf %16, %17 : vector<16x32xf32>
    %cst_10 = arith.constant 0.000000e+00 : f32
    %19 = vector.broadcast %cst_10 : f32 to vector<16x32xf32>
    %20 = arith.maximumf %18, %19 : vector<16x32xf32>
    %cst_11 = arith.constant dense<0.000000e+00> : vector<48x32xf32>
    %21 = tpu.matmul %8, %20, %cst_11 {dimension_numbers = #tpu.dot_dimension_numbers<[1], [0], [0], [1], [0, 0, 1, 1], [], []>} : vector<48x16xf32>, vector<16x32xf32>, vector<48x32xf32> -> vector<48x32xf32>
    %22 = vector.extract_strided_slice %21 {offsets = [0, 0], sizes = [24, 32], strides = [1, 1]} : vector<48x32xf32> to vector<24x32xf32>
    %23 = vector.extract_strided_slice %21 {offsets = [24, 0], sizes = [24, 32], strides = [1, 1]} : vector<48x32xf32> to vector<24x32xf32>
    %c0_12 = arith.constant 0 : index
    %c0_13 = arith.constant 0 : index
    %24 = vector.load %arg1[%c0_12, %c0_13] : memref<89x128xf32, #tpu.memory_space<vmem>>, vector<32x128xf32>
    %c32_14 = arith.constant 32 : index
    %c0_15 = arith.constant 0 : index
    %25 = vector.load %arg1[%c32_14, %c0_15] : memref<89x128xf32, #tpu.memory_space<vmem>>, vector<32x128xf32>
    %c64 = arith.constant 64 : index
    %c0_16 = arith.constant 0 : index
    %26 = vector.load %arg1[%c64, %c0_16] : memref<89x128xf32, #tpu.memory_space<vmem>>, vector<24x128xf32>
    %c88 = arith.constant 88 : index
    %c0_17 = arith.constant 0 : index
    %27 = vector.load %arg1[%c88, %c0_17] : memref<89x128xf32, #tpu.memory_space<vmem>>, vector<1x128xf32>
    %cst_18 = arith.constant dense<0.000000e+00> : vector<24x128xf32>
    %28 = tpu.matmul %22, %24, %cst_18 {dimension_numbers = #tpu.dot_dimension_numbers<[1], [0], [0], [1], [0, 0, 1, 1], [], []>} : vector<24x32xf32>, vector<32x128xf32>, vector<24x128xf32> -> vector<24x128xf32>
    %cst_19 = arith.constant dense<0.000000e+00> : vector<24x128xf32>
    %29 = tpu.matmul %23, %25, %cst_19 {dimension_numbers = #tpu.dot_dimension_numbers<[1], [0], [0], [1], [0, 0, 1, 1], [], []>} : vector<24x32xf32>, vector<32x128xf32>, vector<24x128xf32> -> vector<24x128xf32>
    %30 = arith.addf %28, %29 : vector<24x128xf32>
    %31 = arith.addf %30, %26 : vector<24x128xf32>
    %cst_20 = arith.constant 0.000000e+00 : f32
    %32 = vector.broadcast %cst_20 : f32 to vector<24x128xf32>
    %33 = arith.maximumf %31, %32 : vector<24x128xf32>
    %34 = vector.broadcast %27 : vector<1x128xf32> to vector<24x128xf32>
    %35 = arith.mulf %33, %34 : vector<24x128xf32>
    %cst_21 = arith.constant dense<0.000000e+00> : vector<24xf32>
    %36 = vector.multi_reduction <add>, %35, %cst_21 [1] : vector<24x128xf32> to vector<24xf32>
    %37 = vector.shape_cast %36 : vector<24xf32> to vector<24x1xf32>
    %38 = vector.broadcast %7 : vector<1x1xf32> to vector<24x1xf32>
    %39 = arith.addf %37, %38 : vector<24x1xf32>
    %c0_22 = arith.constant 0 : index
    %c0_23 = arith.constant 0 : index
    %40 = vector.load %arg2[%c0_22, %c0_23] : memref<24x1xf32, #tpu.memory_space<vmem>>, vector<24x1xf32>
    tpu.vector_store %arg2[%c0_22, %c0_23], %39 {strides = array<i32>} : memref<24x1xf32, #tpu.memory_space<vmem>>, vector<24x1xf32>,
    return
  }
}

</mosaic_0001>

<llo_original>
// kernel: _forward_impl.1
$region0: #{_forward_impl.1}
  #allocation0 [shape = 'u32[]', space=smem, size = 0x4, offset = 0x4, fixed_abs, tag = 'smem constant byte address 0x4 - core index']
  #allocation1 [shape = 'u32[144,128]{1,0:T(1,128)}', space=vmem, size = 0x12000, scoped, tag = 'internal scratch']
  %s0 = inlined_call_operand.vmem [shape: f32[128,32], index: 0, kind: input, shape index: {}]
  %s1 = inlined_call_operand.vmem [shape: f32[89,128], index: 1, kind: input, shape index: {}]
  %s2 = inlined_call_operand.vmem [shape: f32[24,1], index: 2, kind: output, shape index: {}]
  %s3 = sld [smem:[#allocation0]]
  $region18: #{_forward_impl.1} parent=0
    _
  %s5 = ssub.s32 1, %s3
  %s6 = scalar_select 0, %s5, %s3
  // Predicated region
  $region2: #{_forward_impl.1} parent=0 // pred_check
    _
  $region3: #{_forward_impl.1} parent=0 // pred_check_branch
    %8 = sbr.rel (0) target = $region5
  $region4: #{_forward_impl.1} parent=0 // pred_region
    _
  $region5: #{_forward_impl.1} parent=0 // pred_fallthru
    _
  // Predicated region
  $region6: #{_forward_impl.1} parent=0 // pred_check
    _
  $region7: #{_forward_impl.1} parent=0 // pred_check_branch
    %10 = sbr.rel (0) target = $region9
  $region8: #{_forward_impl.1} parent=0 // pred_region
    _
  $region9: #{_forward_impl.1} parent=0 // pred_fallthru
    _
  %v11 = vld [vmem:[%s0] sm:$0xff]
  %v12 = vld [vmem:[%s0 + $0x8] sm:$0xff]
  %v13 = vld [vmem:[%s0 + $0x10] sm:$0xff]
  %v14 = vld [vmem:[%s0 + $0x18] sm:$0xff]
  %v15 = vld [vmem:[%s0 + $0x20] sm:$0xff]
  %v16 = vld [vmem:[%s0 + $0x28] sm:$0xff]
  %v17 = vld [vmem:[%s0 + $0x30] sm:$0xff]
  %v18 = vld [vmem:[%s0 + $0x38] sm:$0xff]
  %v19 = vld [vmem:[%s0 + $0x40] sm:$0xff]
  %v20 = vld [vmem:[%s0 + $0x48] sm:$0xff]
  %v21 = vld [vmem:[%s0 + $0x50] sm:$0xff]
  %v22 = vld [vmem:[%s0 + $0x58] sm:$0xff]
  %v23 = vld [vmem:[%s0 + $0x60] sm:$0xff]
  %v24 = vld [vmem:[%s0 + $0x68] sm:$0xff]
  %v25 = vld [vmem:[%s0 + $0x70] sm:$0xff]
  %v26 = vld [vmem:[%s0 + $0x78] sm:$0xff]
  %vm27 = vcmask 130048
  %v29 = vsel %vm27, %v11, 0
  %v32 = vsel %vm27, %v12, 0
  %34 = vmatprep.subr.mxu0 0.0
  %35 = vmatpush1.msra.mxu0 %v13
  %36 = vmatprep.subr.mxu0 0.0
  %37 = vmatpush1.msra.mxu0 %v14
  %38 = vmatprep.subr.mxu0 0.0
  %39 = vmatpush1.msra.mxu0 0.0
  %40 = vmatprep.subr.mxu0 0.0
  %41 = vmatpush1.msra.mxu0 0.0
  %42 = vmatprep.subr.mxu0 0.0
  %43 = vmatpush1.msra.mxu0 0.0
  %44 = vmatprep.subr.mxu0 0.0
  %45 = vmatpush1.msra.mxu0 0.0
  %46 = vmatprep.subr.mxu0 0.0
  %47 = vmatpush1.msra.mxu0 0.0
  %48 = vmatprep.subr.mxu0 0.0
  %49 = vmatpush1.msra.mxu0 0.0
  %50 = vmatprep.subr.mxu0 0.0
  %51 = vmatpush1.msra.mxu0 0.0
  %52 = vmatprep.subr.mxu0 0.0
  %53 = vmatpush1.msra.mxu0 0.0
  %54 = vmatprep.subr.mxu0 0.0
  %55 = vmatpush1.msra.mxu0 0.0
  %56 = vmatprep.subr.mxu0 0.0
  %57 = vmatpush1.msra.mxu0 0.0
  %58 = vmatprep.subr.mxu0 0.0
  %59 = vmatpush1.msra.mxu0 0.0
  %60 = vmatprep.subr.mxu0 0.0
  %61 = vmatpush1.msra.mxu0 0.0
  %62 = vmatprep.subr.mxu0 0.0
  %63 = vmatpush1.msra.mxu0 0.0
  %64 = vmatprep.subr.mxu0 0.0
  %65 = vmatpush1.msra.mxu0 0.0
  %66 = vmatprep.subr.mxu0 0.0
  %67 = vmatpush1.msra.mxu0 0.0
  %68 = vmatprep.subr.mxu0 0.0
  %69 = vmatpush1.msra.mxu0 0.0
  %70 = vmatprep.subr.mxu0 0.0
  %71 = vmatpush1.msra.mxu0 0.0
  %72 = vmatprep.subr.mxu0 0.0
  %73 = vmatpush1.msra.mxu0 0.0
  %74 = vmatprep.subr.mxu0 0.0
  %75 = vmatpush1.msra.mxu0 0.0
  %76 = vmatprep.subr.mxu0 0.0
  %77 = vmatpush1.msra.mxu0 0.0
  %78 = vmatprep.subr.mxu0 0.0
  %79 = vmatpush1.msra.mxu0 0.0
  %80 = vmatprep.subr.mxu0 0.0
  %81 = vmatpush1.msra.mxu0 0.0
  %82 = vmatprep.subr.mxu0 0.0
  %83 = vmatpush1.msra.mxu0 0.0
  %84 = vmatprep.subr.mxu0 0.0
  %85 = vmatpush1.msra.mxu0 0.0
  %86 = vmatprep.subr.mxu0 0.0
  %87 = vmatpush1.msra.mxu0 0.0
  %88 = vmatprep.subr.mxu0 0.0
  %89 = vmatpush1.msra.mxu0 0.0
  %90 = vmatprep.subr.mxu0 0.0
  %91 = vmatpush1.msra.mxu0 0.0
  %92 = vmatprep.subr.mxu0 0.0
  %93 = vmatpush1.msra.mxu0 0.0
  %94 = vmatprep.subr.mxu0 0.0
  %95 = vmatpush1.msra.mxu0 0.0
  %96 = vmatprep.subr.mxu0 0.0
  %97 = vmatpush1.msra.mxu0 0.0
  %98 = vmatprep.mubr.f32.mxu0 0.0
  %99 = vmatmul.mubr.f32.gmra.mrb[0].mxu0 %v29
  %v100 = vpop.f32.mrb[0].mxu0
  %v101 = vadd.f32 0.0, %v100
  %v102 = vpop.f32.mrb[0].mxu0
  %103 = vmatprep.mubr.f32.mxu0 0.0
  %104 = vmatmul.mubr.f32.gmra.mrb[0].mxu0 %v32
  %v105 = vpop.f32.mrb[0].mxu0
  %v106 = vadd.f32 0.0, %v105
  %v107 = vpop.f32.mrb[0].mxu0
  %108 = vdwg.mxu0
  %v109 = vlaneseq
  %v110 = vshrl.u32 %v109, 7
  %v111 = vsub.s32 0, %v110
  %v112 = vrot.slane %v20, %v111
  %vm113 = vcmask 64512
  %v115 = vsel %vm113, %v101, 0
  %v118 = vsel %vm113, %v106, 0
  %120 = vmatprep.subr.mxu0 0.0
  %121 = vmatpush1.msra.mxu0 %v15
  %122 = vmatprep.subr.mxu0 0.0
  %123 = vmatpush1.msra.mxu0 0.0
  %124 = vmatprep.subr.mxu0 0.0
  %125 = vmatpush1.msra.mxu0 0.0
  %126 = vmatprep.subr.mxu0 0.0
  %127 = vmatpush1.msra.mxu0 0.0
  %128 = vmatprep.subr.mxu0 0.0
  %129 = vmatpush1.msra.mxu0 0.0
  %130 = vmatprep.subr.mxu0 0.0
  %131 = vmatpush1.msra.mxu0 0.0
  %132 = vmatprep.subr.mxu0 0.0
  %133 = vmatpush1.msra.mxu0 0.0
  %134 = vmatprep.subr.mxu0 0.0
  %135 = vmatpush1.msra.mxu0 0.0
  %136 = vmatprep.subr.mxu0 0.0
  %137 = vmatpush1.msra.mxu0 0.0
  %138 = vmatprep.subr.mxu0 0.0
  %139 = vmatpush1.msra.mxu0 0.0
  %140 = vmatprep.subr.mxu0 0.0
  %141 = vmatpush1.msra.mxu0 0.0
  %142 = vmatprep.subr.mxu0 0.0
  %143 = vmatpush1.msra.mxu0 0.0
  %144 = vmatprep.subr.mxu0 0.0
  %145 = vmatpush1.msra.mxu0 0.0
  %146 = vmatprep.subr.mxu0 0.0
  %147 = vmatpush1.msra.mxu0 0.0
  %148 = vmatprep.subr.mxu0 0.0
  %149 = vmatpush1.msra.mxu0 0.0
  %150 = vmatprep.subr.mxu0 0.0
  %151 = vmatpush1.msra.mxu0 0.0
  %152 = vmatprep.subr.mxu0 0.0
  %153 = vmatpush1.msra.mxu0 0.0
  %154 = vmatprep.subr.mxu0 0.0
  %155 = vmatpush1.msra.mxu0 0.0
  %156 = vmatprep.subr.mxu0 0.0
  %157 = vmatpush1.msra.mxu0 0.0
  %158 = vmatprep.subr.mxu0 0.0
  %159 = vmatpush1.msra.mxu0 0.0
  %160 = vmatprep.subr.mxu0 0.0
  %161 = vmatpush1.msra.mxu0 0.0
  %162 = vmatprep.subr.mxu0 0.0
  %163 = vmatpush1.msra.mxu0 0.0
  %164 = vmatprep.subr.mxu0 0.0
  %165 = vmatpush1.msra.mxu0 0.0
  %166 = vmatprep.subr.mxu0 0.0
  %167 = vmatpush1.msra.mxu0 0.0
  %168 = vmatprep.subr.mxu0 0.0
  %169 = vmatpush1.msra.mxu0 0.0
  %170 = vmatprep.subr.mxu0 0.0
  %171 = vmatpush1.msra.mxu0 0.0
  %172 = vmatprep.subr.mxu0 0.0
  %173 = vmatpush1.msra.mxu0 0.0
  %174 = vmatprep.subr.mxu0 0.0
  %175 = vmatpush1.msra.mxu0 0.0
  %176 = vmatprep.subr.mxu0 0.0
  %177 = vmatpush1.msra.mxu0 0.0
  %178 = vmatprep.subr.mxu0 0.0
  %179 = vmatpush1.msra.mxu0 0.0
  %180 = vmatprep.subr.mxu0 0.0
  %181 = vmatpush1.msra.mxu0 0.0
  %182 = vmatprep.subr.mxu0 0.0
  %183 = vmatpush1.msra.mxu0 0.0
  %184 = vmatprep.mubr.f32.mxu0 0.0
  %185 = vmatmul.mubr.f32.gmra.mrb[0].mxu0 %v115
  %v186 = vpop.f32.mrb[0].mxu0
  %v187 = vadd.f32 %v112, %v186
  %v188 = vpop.f32.mrb[0].mxu0
  %189 = vmatprep.mubr.f32.mxu0 0.0
  %190 = vmatmul.mubr.f32.gmra.mrb[0].mxu0 %v118
  %v191 = vpop.f32.mrb[0].mxu0
  %v192 = vadd.f32 %v112, %v191
  %v193 = vpop.f32.mrb[0].mxu0
  %194 = vdwg.mxu0
  %v195 = vmax.f32 %v187, 0.0
  %v196 = vmax.f32 %v192, 0.0
  %vm197 = vcmask 261120
  %v199 = vsel %vm197, %v195, 0
  %v202 = vsel %vm197, %v196, 0
  %204 = vmatprep.subr.mxu0 0.0
  %205 = vmatpush1.msra.mxu0 %v16
  %206 = vmatprep.subr.mxu0 0.0
  %207 = vmatpush1.msra.mxu0 %v17
  %208 = vmatprep.subr.mxu0 0.0
  %209 = vmatpush1.msra.mxu0 %v18
  %210 = vmatprep.subr.mxu0 0.0
  %211 = vmatpush1.msra.mxu0 %v19
  %212 = vmatprep.subr.mxu0 0.0
  %213 = vmatpush1.msra.mxu0 0.0
  %214 = vmatprep.subr.mxu0 0.0
  %215 = vmatpush1.msra.mxu0 0.0
  %216 = vmatprep.subr.mxu0 0.0
  %217 = vmatpush1.msra.mxu0 0.0
  %218 = vmatprep.subr.mxu0 0.0
  %219 = vmatpush1.msra.mxu0 0.0
  %220 = vmatprep.subr.mxu0 0.0
  %221 = vmatpush1.msra.mxu0 0.0
  %222 = vmatprep.subr.mxu0 0.0
  %223 = vmatpush1.msra.mxu0 0.0
  %224 = vmatprep.subr.mxu0 0.0
  %225 = vmatpush1.msra.mxu0 0.0
  %226 = vmatprep.subr.mxu0 0.0
  %227 = vmatpush1.msra.mxu0 0.0
  %228 = vmatprep.subr.mxu0 0.0
  %229 = vmatpush1.msra.mxu0 0.0
  %230 = vmatprep.subr.mxu0 0.0
  %231 = vmatpush1.msra.mxu0 0.0
  %232 = vmatprep.subr.mxu0 0.0
  %233 = vmatpush1.msra.mxu0 0.0
  %234 = vmatprep.subr.mxu0 0.0
  %235 = vmatpush1.msra.mxu0 0.0
  %236 = vmatprep.subr.mxu0 0.0
  %237 = vmatpush1.msra.mxu0 0.0
  %238 = vmatprep.subr.mxu0 0.0
  %239 = vmatpush1.msra.mxu0 0.0
  %240 = vmatprep.subr.mxu0 0.0
  %241 = vmatpush1.msra.mxu0 0.0
  %242 = vmatprep.subr.mxu0 0.0
  %243 = vmatpush1.msra.mxu0 0.0
  %244 = vmatprep.subr.mxu0 0.0
  %245 = vmatpush1.msra.mxu0 0.0
  %246 = vmatprep.subr.mxu0 0.0
  %247 = vmatpush1.msra.mxu0 0.0
  %248 = vmatprep.subr.mxu0 0.0
  %249 = vmatpush1.msra.mxu0 0.0
  %250 = vmatprep.subr.mxu0 0.0
  %251 = vmatpush1.msra.mxu0 0.0
  %252 = vmatprep.subr.mxu0 0.0
  %253 = vmatpush1.msra.mxu0 0.0
  %254 = vmatprep.subr.mxu0 0.0
  %255 = vmatpush1.msra.mxu0 0.0
  %256 = vmatprep.subr.mxu0 0.0
  %257 = vmatpush1.msra.mxu0 0.0
  %258 = vmatprep.subr.mxu0 0.0
  %259 = vmatpush1.msra.mxu0 0.0
  %260 = vmatprep.subr.mxu0 0.0
  %261 = vmatpush1.msra.mxu0 0.0
  %262 = vmatprep.subr.mxu0 0.0
  %263 = vmatpush1.msra.mxu0 0.0
  %264 = vmatprep.subr.mxu0 0.0
  %265 = vmatpush1.msra.mxu0 0.0
  %266 = vmatprep.subr.mxu0 0.0
  %267 = vmatpush1.msra.mxu0 0.0
  %268 = vmatprep.mubr.f32.mxu0 0.0
  %269 = vmatmul.mubr.f32.gmra.mrb[0].mxu0 %v199
  %v270 = vpop.f32.mrb[0].mxu0
  %v271 = vadd.f32 0.0, %v270
  %v272 = vpop.f32.mrb[0].mxu0
  %273 = vmatprep.mubr.f32.mxu0 0.0
  %274 = vmatmul.mubr.f32.gmra.mrb[0].mxu0 %v202
  %v275 = vpop.f32.mrb[0].mxu0
  %v276 = vadd.f32 0.0, %v275
  %v277 = vpop.f32.mrb[0].mxu0
  %278 = vdwg.mxu0
  %v279 = vlaneseq
  %v280 = vshrl.u32 %v279, 7
  %v281 = vsub.s32 1, %v280
  %v282 = vrot.slane %v20, %v281
  %283 = vmatprep.subr.mxu0 0.0
  %284 = vmatpush1.msra.mxu0 %v271
  %285 = vmatprep.subr.mxu0 0.0
  %286 = vmatpush1.msra.mxu0 %v276
  %287 = vmatprep.subr.mxu0 0.0
  %288 = vmatpush1.msra.mxu0 0.0
  %289 = vmatprep.subr.mxu0 0.0
  %290 = vmatpush1.msra.mxu0 0.0
  %291 = vmatprep.subr.mxu0 0.0
  %292 = vmatpush1.msra.mxu0 0.0
  %293 = vmatprep.subr.mxu0 0.0
  %294 = vmatpush1.msra.mxu0 0.0
  %295 = vmatprep.subr.mxu0 0.0
  %296 = vmatpush1.msra.mxu0 0.0
  %297 = vmatprep.subr.mxu0 0.0
  %298 = vmatpush1.msra.mxu0 0.0
  %299 = vmatprep.subr.mxu0 0.0
  %300 = vmatpush1.msra.mxu0 0.0
  %301 = vmatprep.subr.mxu0 0.0
  %302 = vmatpush1.msra.mxu0 0.0
  %303 = vmatprep.subr.mxu0 0.0
  %304 = vmatpush1.msra.mxu0 0.0
  %305 = vmatprep.subr.mxu0 0.0
  %306 = vmatpush1.msra.mxu0 0.0
  %307 = vmatprep.subr.mxu0 0.0
  %308 = vmatpush1.msra.mxu0 0.0
  %309 = vmatprep.subr.mxu0 0.0
  %310 = vmatpush1.msra.mxu0 0.0
  %311 = vmatprep.subr.mxu0 0.0
  %312 = vmatpush1.msra.mxu0 0.0
  %313 = vmatprep.subr.mxu0 0.0
  %314 = vmatpush1.msra.mxu0 0.0
  %315 = vmatprep.subr.mxu0 0.0
  %316 = vmatpush1.msra.mxu0 0.0
  %317 = vmatprep.subr.mxu0 0.0
  %318 = vmatpush1.msra.mxu0 0.0
  %319 = vmatprep.subr.mxu0 0.0
  %320 = vmatpush1.msra.mxu0 0.0
  %321 = vmatprep.subr.mxu0 0.0
  %322 = vmatpush1.msra.mxu0 0.0
  %323 = vmatprep.subr.mxu0 0.0
  %324 = vmatpush1.msra.mxu0 0.0
  %325 = vmatprep.subr.mxu0 0.0
  %326 = vmatpush1.msra.mxu0 0.0
  %327 = vmatprep.subr.mxu0 0.0
  %328 = vmatpush1.msra.mxu0 0.0
  %329 = vmatprep.subr.mxu0 0.0
  %330 = vmatpush1.msra.mxu0 0.0
  %331 = vmatprep.subr.mxu0 0.0
  %332 = vmatpush1.msra.mxu0 0.0
  %333 = vmatprep.subr.mxu0 0.0
  %334 = vmatpush1.msra.mxu0 0.0
  %335 = vmatprep.subr.mxu0 0.0
  %336 = vmatpush1.msra.mxu0 0.0
  %337 = vmatprep.subr.mxu0 0.0
  %338 = vmatpush1.msra.mxu0 0.0
  %339 = vmatprep.subr.mxu0 0.0
  %340 = vmatpush1.msra.mxu0 0.0
  %341 = vmatprep.subr.mxu0 0.0
  %342 = vmatpush1.msra.mxu0 0.0
  %343 = vmatprep.subr.mxu0 0.0
  %344 = vmatpush1.msra.mxu0 0.0
  %345 = vmatprep.subr.mxu0 0.0
  %346 = vmatpush1.msra.mxu0 0.0
  %347 = vmatprep.mubr.f32.mxu0 0.0
  %348 = vmatmul.mubr.f32.gmra.mrb[0].mxu0 %v29
  %v349 = vpop.f32.mrb[0].mxu0
  %v350 = vadd.f32 %v282, %v349
  %v351 = vpop.f32.mrb[0].mxu0
  %352 = vmatprep.mubr.f32.mxu0 0.0
  %353 = vmatmul.mubr.f32.gmra.mrb[0].mxu0 %v32
  %v354 = vpop.f32.mrb[0].mxu0
  %v355 = vadd.f32 %v282, %v354
  %v356 = vpop.f32.mrb[0].mxu0
  %357 = vdwg.mxu0
  %v358 = vmax.f32 %v350, 0.0
  %v359 = vmax.f32 %v355, 0.0
  %v361 = vsel %vm27, %v21, 0
  %v364 = vsel %vm27, %v22, 0
  %v367 = vsel %vm27, %v23, 0
  %v370 = vsel %vm27, %v24, 0
  %v373 = vsel %vm27, %v25, 0
  %v376 = vsel %vm27, %v26, 0
  %378 = vmatprep.subr.mxu0 0.0
  %379 = vmatpush1.msra.mxu0 %v358
  %380 = vmatprep.subr.mxu0 0.0
  %381 = vmatpush1.msra.mxu0 %v359
  %382 = vmatprep.subr.mxu0 0.0
  %383 = vmatpush1.msra.mxu0 0.0
  %384 = vmatprep.subr.mxu0 0.0
  %385 = vmatpush1.msra.mxu0 0.0
  %386 = vmatprep.subr.mxu0 0.0
  %387 = vmatpush1.msra.mxu0 0.0
  %388 = vmatprep.subr.mxu0 0.0
  %389 = vmatpush1.msra.mxu0 0.0
  %390 = vmatprep.subr.mxu0 0.0
  %391 = vmatpush1.msra.mxu0 0.0
  %392 = vmatprep.subr.mxu0 0.0
  %393 = vmatpush1.msra.mxu0 0.0
  %394 = vmatprep.subr.mxu0 0.0
  %395 = vmatpush1.msra.mxu0 0.0
  %396 = vmatprep.subr.mxu0 0.0
  %397 = vmatpush1.msra.mxu0 0.0
  %398 = vmatprep.subr.mxu0 0.0
  %399 = vmatpush1.msra.mxu0 0.0
  %400 = vmatprep.subr.mxu0 0.0
  %401 = vmatpush1.msra.mxu0 0.0
  %402 = vmatprep.subr.mxu0 0.0
  %403 = vmatpush1.msra.mxu0 0.0
  %404 = vmatprep.subr.mxu0 0.0
  %405 = vmatpush1.msra.mxu0 0.0
  %406 = vmatprep.subr.mxu0 0.0
  %407 = vmatpush1.msra.mxu0 0.0
  %408 = vmatprep.subr.mxu0 0.0
  %409 = vmatpush1.msra.mxu0 0.0
  %410 = vmatprep.subr.mxu0 0.0
  %411 = vmatpush1.msra.mxu0 0.0
  %412 = vmatprep.subr.mxu0 0.0
  %413 = vmatpush1.msra.mxu0 0.0
  %414 = vmatprep.subr.mxu0 0.0
  %415 = vmatpush1.msra.mxu0 0.0
  %416 = vmatprep.subr.mxu0 0.0
  %417 = vmatpush1.msra.mxu0 0.0
  %418 = vmatprep.subr.mxu0 0.0
  %419 = vmatpush1.msra.mxu0 0.0
  %420 = vmatprep.subr.mxu0 0.0
  %421 = vmatpush1.msra.mxu0 0.0
  %422 = vmatprep.subr.mxu0 0.0
  %423 = vmatpush1.msra.mxu0 0.0
  %424 = vmatprep.subr.mxu0 0.0
  %425 = vmatpush1.msra.mxu0 0.0
  %426 = vmatprep.subr.mxu0 0.0
  %427 = vmatpush1.msra.mxu0 0.0
  %428 = vmatprep.subr.mxu0 0.0
  %429 = vmatpush1.msra.mxu0 0.0
  %430 = vmatprep.subr.mxu0 0.0
  %431 = vmatpush1.msra.mxu0 0.0
  %432 = vmatprep.subr.mxu0 0.0
  %433 = vmatpush1.msra.mxu0 0.0
  %434 = vmatprep.subr.mxu0 0.0
  %435 = vmatpush1.msra.mxu0 0.0
  %436 = vmatprep.subr.mxu0 0.0
  %437 = vmatpush1.msra.mxu0 0.0
  %438 = vmatprep.subr.mxu0 0.0
  %439 = vmatpush1.msra.mxu0 0.0
  %440 = vmatprep.subr.mxu0 0.0
  %441 = vmatpush1.msra.mxu0 0.0
  %442 = vmatprep.mubr.f32.mxu0 0.0
  %443 = vmatmul.mubr.f32.gmra.mrb[0].mxu0 %v361
  %v444 = vpop.f32.mrb[0].mxu0
  %v445 = vadd.f32 0.0, %v444
  %v446 = vpop.f32.mrb[0].mxu0
  %447 = vmatprep.mubr.f32.mxu0 0.0
  %448 = vmatmul.mubr.f32.gmra.mrb[0].mxu0 %v364
  %v449 = vpop.f32.mrb[0].mxu0
  %v450 = vadd.f32 0.0, %v449
  %v451 = vpop.f32.mrb[0].mxu0
  %452 = vmatprep.mubr.f32.mxu0 0.0
  %453 = vmatmul.mubr.f32.gmra.mrb[0].mxu0 %v367
  %v454 = vpop.f32.mrb[0].mxu0
  %v455 = vadd.f32 0.0, %v454
  %v456 = vpop.f32.mrb[0].mxu0
  %457 = vmatprep.mubr.f32.mxu0 0.0
  %458 = vmatmul.mubr.f32.gmra.mrb[0].mxu0 %v370
  %v459 = vpop.f32.mrb[0].mxu0
  %v460 = vadd.f32 0.0, %v459
  %v461 = vpop.f32.mrb[0].mxu0
  %462 = vmatprep.mubr.f32.mxu0 0.0
  %463 = vmatmul.mubr.f32.gmra.mrb[0].mxu0 %v373
  %v464 = vpop.f32.mrb[0].mxu0
  %v465 = vadd.f32 0.0, %v464
  %v466 = vpop.f32.mrb[0].mxu0
  %467 = vmatprep.mubr.f32.mxu0 0.0
  %468 = vmatmul.mubr.f32.gmra.mrb[0].mxu0 %v376
  %v469 = vpop.f32.mrb[0].mxu0
  %v470 = vadd.f32 0.0, %v469
  %v471 = vpop.f32.mrb[0].mxu0
  %472 = vdwg.mxu0
  %v473 = vld [vmem:[%s1] sm:$0xff]
  %v474 = vld [vmem:[%s1 + $0x8] sm:$0xff]
  %v475 = vld [vmem:[%s1 + $0x10] sm:$0xff]
  %v476 = vld [vmem:[%s1 + $0x18] sm:$0xff]
  %v477 = vld [vmem:[%s1 + $0x20] sm:$0xff]
  %v478 = vld [vmem:[%s1 + $0x28] sm:$0xff]
  %v479 = vld [vmem:[%s1 + $0x30] sm:$0xff]
  %v480 = vld [vmem:[%s1 + $0x38] sm:$0xff]
  %v481 = vld [vmem:[%s1 + $0x40] sm:$0xff]
  %v482 = vld [vmem:[%s1 + $0x48] sm:$0xff]
  %v483 = vld [vmem:[%s1 + $0x50] sm:$0xff]
  %v484 = vld [vmem:[%s1 + $0x58] sm:$0x1]
  %v486 = vsel %vm197, %v460, 0
  %v489 = vsel %vm197, %v465, 0
  %v492 = vsel %vm197, %v470, 0
  %494 = vmatprep.subr.mxu0 0.0
  %495 = vmatpush1.msra.mxu0 %v477
  %496 = vmatprep.subr.mxu0 0.0
  %497 = vmatpush1.msra.mxu0 %v478
  %498 = vmatprep.subr.mxu0 0.0
  %499 = vmatpush1.msra.mxu0 %v479
  %500 = vmatprep.subr.mxu0 0.0
  %501 = vmatpush1.msra.mxu0 %v480
  %502 = vmatprep.subr.mxu0 0.0
  %503 = vmatpush1.msra.mxu0 0.0
  %504 = vmatprep.subr.mxu0 0.0
  %505 = vmatpush1.msra.mxu0 0.0
  %506 = vmatprep.subr.mxu0 0.0
  %507 = vmatpush1.msra.mxu0 0.0
  %508 = vmatprep.subr.mxu0 0.0
  %509 = vmatpush1.msra.mxu0 0.0
  %510 = vmatprep.subr.mxu0 0.0
  %511 = vmatpush1.msra.mxu0 0.0
  %512 = vmatprep.subr.mxu0 0.0
  %513 = vmatpush1.msra.mxu0 0.0
  %514 = vmatprep.subr.mxu0 0.0
  %515 = vmatpush1.msra.mxu0 0.0
  %516 = vmatprep.subr.mxu0 0.0
  %517 = vmatpush1.msra.mxu0 0.0
  %518 = vmatprep.subr.mxu0 0.0
  %519 = vmatpush1.msra.mxu0 0.0
  %520 = vmatprep.subr.mxu0 0.0
  %521 = vmatpush1.msra.mxu0 0.0
  %522 = vmatprep.subr.mxu0 0.0
  %523 = vmatpush1.msra.mxu0 0.0
  %524 = vmatprep.subr.mxu0 0.0
  %525 = vmatpush1.msra.mxu0 0.0
  %526 = vmatprep.subr.mxu0 0.0
  %527 = vmatpush1.msra.mxu0 0.0
  %528 = vmatprep.subr.mxu0 0.0
  %529 = vmatpush1.msra.mxu0 0.0
  %530 = vmatprep.subr.mxu0 0.0
  %531 = vmatpush1.msra.mxu0 0.0
  %532 = vmatprep.subr.mxu0 0.0
  %533 = vmatpush1.msra.mxu0 0.0
  %534 = vmatprep.subr.mxu0 0.0
  %535 = vmatpush1.msra.mxu0 0.0
  %536 = vmatprep.subr.mxu0 0.0
  %537 = vmatpush1.msra.mxu0 0.0
  %538 = vmatprep.subr.mxu0 0.0
  %539 = vmatpush1.msra.mxu0 0.0
  %540 = vmatprep.subr.mxu0 0.0
  %541 = vmatpush1.msra.mxu0 0.0
  %542 = vmatprep.subr.mxu0 0.0
  %543 = vmatpush1.msra.mxu0 0.0
  %544 = vmatprep.subr.mxu0 0.0
  %545 = vmatpush1.msra.mxu0 0.0
  %546 = vmatprep.subr.mxu0 0.0
  %547 = vmatpush1.msra.mxu0 0.0
  %548 = vmatprep.subr.mxu0 0.0
  %549 = vmatpush1.msra.mxu0 0.0
  %550 = vmatprep.subr.mxu0 0.0
  %551 = vmatpush1.msra.mxu0 0.0
  %552 = vmatprep.subr.mxu0 0.0
  %553 = vmatpush1.msra.mxu0 0.0
  %554 = vmatprep.subr.mxu0 0.0
  %555 = vmatpush1.msra.mxu0 0.0
  %556 = vmatprep.subr.mxu0 0.0
  %557 = vmatpush1.msra.mxu0 0.0
  %558 = vmatprep.mubr.f32.mxu0 0.0
  %559 = vmatmul.mubr.f32.gmra.mrb[0].mxu0 %v486
  %v560 = vpop.f32.mrb[0].mxu0
  %v561 = vadd.f32 0.0, %v560
  %v562 = vpop.f32.mrb[0].mxu0
  %563 = vmatprep.mubr.f32.mxu0 0.0
  %564 = vmatmul.mubr.f32.gmra.mrb[0].mxu0 %v489
  %v565 = vpop.f32.mrb[0].mxu0
  %v566 = vadd.f32 0.0, %v565
  %v567 = vpop.f32.mrb[0].mxu0
  %568 = vmatprep.mubr.f32.mxu0 0.0
  %569 = vmatmul.mubr.f32.gmra.mrb[0].mxu0 %v492
  %v570 = vpop.f32.mrb[0].mxu0
  %v571 = vadd.f32 0.0, %v570
  %v572 = vpop.f32.mrb[0].mxu0
  %573 = vdwg.mxu0
  %v575 = vsel %vm197, %v445, 0
  %v578 = vsel %vm197, %v450, 0
  %v581 = vsel %vm197, %v455, 0
  %583 = vmatprep.subr.mxu0 0.0
  %584 = vmatpush1.msra.mxu0 %v473
  %585 = vmatprep.subr.mxu0 0.0
  %586 = vmatpush1.msra.mxu0 %v474
  %587 = vmatprep.subr.mxu0 0.0
  %588 = vmatpush1.msra.mxu0 %v475
  %589 = vmatprep.subr.mxu0 0.0
  %590 = vmatpush1.msra.mxu0 %v476
  %591 = vmatprep.subr.mxu0 0.0
  %592 = vmatpush1.msra.mxu0 0.0
  %593 = vmatprep.subr.mxu0 0.0
  %594 = vmatpush1.msra.mxu0 0.0
  %595 = vmatprep.subr.mxu0 0.0
  %596 = vmatpush1.msra.mxu0 0.0
  %597 = vmatprep.subr.mxu0 0.0
  %598 = vmatpush1.msra.mxu0 0.0
  %599 = vmatprep.subr.mxu0 0.0
  %600 = vmatpush1.msra.mxu0 0.0
  %601 = vmatprep.subr.mxu0 0.0
  %602 = vmatpush1.msra.mxu0 0.0
  %603 = vmatprep.subr.mxu0 0.0
  %604 = vmatpush1.msra.mxu0 0.0
  %605 = vmatprep.subr.mxu0 0.0
  %606 = vmatpush1.msra.mxu0 0.0
  %607 = vmatprep.subr.mxu0 0.0
  %608 = vmatpush1.msra.mxu0 0.0
  %609 = vmatprep.subr.mxu0 0.0
  %610 = vmatpush1.msra.mxu0 0.0
  %611 = vmatprep.subr.mxu0 0.0
  %612 = vmatpush1.msra.mxu0 0.0
  %613 = vmatprep.subr.mxu0 0.0
  %614 = vmatpush1.msra.mxu0 0.0
  %615 = vmatprep.subr.mxu0 0.0
  %616 = vmatpush1.msra.mxu0 0.0
  %617 = vmatprep.subr.mxu0 0.0
  %618 = vmatpush1.msra.mxu0 0.0
  %619 = vmatprep.subr.mxu0 0.0
  %620 = vmatpush1.msra.mxu0 0.0
  %621 = vmatprep.subr.mxu0 0.0
  %622 = vmatpush1.msra.mxu0 0.0
  %623 = vmatprep.subr.mxu0 0.0
  %624 = vmatpush1.msra.mxu0 0.0
  %625 = vmatprep.subr.mxu0 0.0
  %626 = vmatpush1.msra.mxu0 0.0
  %627 = vmatprep.subr.mxu0 0.0
  %628 = vmatpush1.msra.mxu0 0.0
  %629 = vmatprep.subr.mxu0 0.0
  %630 = vmatpush1.msra.mxu0 0.0
  %631 = vmatprep.subr.mxu0 0.0
  %632 = vmatpush1.msra.mxu0 0.0
  %633 = vmatprep.subr.mxu0 0.0
  %634 = vmatpush1.msra.mxu0 0.0
  %635 = vmatprep.subr.mxu0 0.0
  %636 = vmatpush1.msra.mxu0 0.0
  %637 = vmatprep.subr.mxu0 0.0
  %638 = vmatpush1.msra.mxu0 0.0
  %639 = vmatprep.subr.mxu0 0.0
  %640 = vmatpush1.msra.mxu0 0.0
  %641 = vmatprep.subr.mxu0 0.0
  %642 = vmatpush1.msra.mxu0 0.0
  %643 = vmatprep.subr.mxu0 0.0
  %644 = vmatpush1.msra.mxu0 0.0
  %645 = vmatprep.subr.mxu0 0.0
  %646 = vmatpush1.msra.mxu0 0.0
  %647 = vmatprep.mubr.f32.mxu0 0.0
  %648 = vmatmul.mubr.f32.gmra.mrb[0].mxu0 %v575
  %v649 = vpop.f32.mrb[0].mxu0
  %v650 = vadd.f32 %v561, %v649
  %v651 = vpop.f32.mrb[0].mxu0
  %652 = vmatprep.mubr.f32.mxu0 0.0
  %653 = vmatmul.mubr.f32.gmra.mrb[0].mxu0 %v578
  %v654 = vpop.f32.mrb[0].mxu0
  %v655 = vadd.f32 %v566, %v654
  %v656 = vpop.f32.mrb[0].mxu0
  %657 = vmatprep.mubr.f32.mxu0 0.0
  %658 = vmatmul.mubr.f32.gmra.mrb[0].mxu0 %v581
  %v659 = vpop.f32.mrb[0].mxu0
  %v660 = vadd.f32 %v571, %v659
  %v661 = vpop.f32.mrb[0].mxu0
  %662 = vdwg.mxu0
  %v663 = vadd.f32 %v650, %v481
  %v664 = vadd.f32 %v655, %v482
  %v665 = vadd.f32 %v660, %v483
  %v666 = vmax.f32 %v663, 0.0
  %v667 = vmax.f32 %v664, 0.0
  %v668 = vmax.f32 %v665, 0.0
  %v669 = vlaneseq
  %v670 = vshrl.u32 %v669, 7
  %v671 = vsub.s32 0, %v670
  %v672 = vrot.slane %v484, %v671
  %v673 = vmul.f32 %v666, %v672
  %v674 = vmul.f32 %v667, %v672
  %v675 = vmul.f32 %v668, %v672
  %676 = vadd.xlane.f32.xlu0 %v673
  %v677 = vpop.xlane.xlu0 %676
  %678 = vadd.xlane.f32.xlu0 %v674
  %v679 = vpop.xlane.xlu0 %678
  %680 = vadd.xlane.f32.xlu0 %v675
  %v681 = vpop.xlane.xlu0 %680
  %v682 = vlaneseq
  %v683 = vshrl.u32 %v682, 7
  %v684 = vsub.s32 2, %v683
  %v685 = vrot.slane %v20, %v684
  %v686 = vadd.f32 %v677, %v685
  %v687 = vadd.f32 %v679, %v685
  %v688 = vadd.f32 %v681, %v685
  %vm689 = vcmask 7168
  %690 = vst.msk [vmem:[%s2] sm:$0xff] %vm689, %v686
  %691 = vst.msk [vmem:[%s2 + $0x8] sm:$0xff] %vm689, %v687
  %692 = vst.msk [vmem:[%s2 + $0x10] sm:$0xff] %vm689, %v688
  // Predicated region
  $region10: #{_forward_impl.1} parent=0 // pred_check
    _
  $region11: #{_forward_impl.1} parent=0 // pred_check_branch
    %694 = sbr.rel (0) target = $region13
  $region12: #{_forward_impl.1} parent=0 // pred_region
    _
  $region13: #{_forward_impl.1} parent=0 // pred_fallthru
    _
  // Predicated region
  $region14: #{_forward_impl.1} parent=0 // pred_check
    _
  $region15: #{_forward_impl.1} parent=0 // pred_check_branch
    %696 = sbr.rel (0) target = $region17
  $region16: #{_forward_impl.1} parent=0 // pred_region
    _
  $region17: #{_forward_impl.1} parent=0 // pred_fallthru
    _

</llo_original>
